<compile_context>
chip_gen: v7x
topology: tpu7x:2x2x1
jax: 0.10.0
libtpu: 0.0.40
codegen_flags: <defaults>
</compile_context>

<pallas_src>
import functools

import jax
import jax.numpy as jnp
from jax.experimental import pallas as pl
from jax.experimental.pallas import tpu as pltpu


def _round_up(x, m):
    return ((x + m - 1) // m) * m


def _block_rows(desired, total):
    """Legal sublane block size: a multiple of 8, or the full dim if it fits."""
    d = max(8, (int(desired) // 8) * 8)
    return total if total <= d else d


def highway_kernel(x_ref, w_ref, b_ref, o_ref, *, c, c_pad):
    x = x_ref[...]
    # One fused MXU matmul for both projections, f32 accumulate. When the
    # weight slab is bf16 the x tile is cast so both operands run the MXU at
    # full rate; the f32 gating math below still uses the original f32 x.
    xw = jnp.dot(x.astype(w_ref.dtype), w_ref[...],
                 preferred_element_type=jnp.float32)
    h = jnp.maximum(xw[:, :c] + b_ref[:, :c], 0.0)                  # relu branch
    t = jax.nn.sigmoid(xw[:, c_pad:c_pad + c] + b_ref[:, c_pad:c_pad + c])
    # out = h*t + x*(1-t)  ==  x + t*(h - x)
    o_ref[...] = (x + t * (h - x)).astype(o_ref.dtype)


def pack_highway_params(w1, b1, w2, b2, *, weight_dtype=None):
    """Fuse the two Linear layers once, at parameter-init time.

    w1/w2: [C, C] (transpose of PyTorch's [out, in]); b1/b2: [C].
    Returns a params dict holding both fused layouts:
      'general': [C, 2*c_pad] slab (halves 128-lane aligned) + [1, 2*c_pad] bias
      'packed' : block-diagonal [128, 2*128] slab + tiled bias, used when
                 C <= 128 and 128 % C == 0 so x/out stream lane-dense as
                 [M*C/128, 128].
    """
    C = int(w1.shape[0])
    if w1.shape != (C, C) or w2.shape != (C, C) or b1.shape != (C,) or b2.shape != (C,):
        raise ValueError("expected square [C, C] weights and [C] biases")
    wd = jnp.dtype(weight_dtype) if weight_dtype is not None else jnp.dtype(jnp.float32)

    w1f, w2f = w1.astype(jnp.float32), w2.astype(jnp.float32)
    b1f, b2f = b1.astype(jnp.float32), b2.astype(jnp.float32)

    # General layout: both projections side by side, each half padded to a
    # multiple of 128 output lanes so its slice starts lane-tile aligned.
    c_pad = _round_up(C, 128)
    wg = jnp.zeros((C, 2 * c_pad), jnp.float32)
    wg = wg.at[:, :C].set(w1f).at[:, c_pad:c_pad + C].set(w2f).astype(wd)
    bg = jnp.zeros((1, 2 * c_pad), jnp.float32)
    bg = bg.at[0, :C].set(b1f).at[0, c_pad:c_pad + C].set(b2f)

    packed = None
    if C <= 128 and 128 % C == 0:
        # Lane-dense layout: P = 128//C logical rows per 128-lane row.
        # Block-diagonal weights so [rows, 128] @ [128, 256] yields H packed
        # in cols [:128] and T packed in cols [128:], matching the x packing.
        P = 128 // C
        eye = jnp.eye(P, dtype=jnp.float32)
        wp = jnp.concatenate([jnp.kron(eye, w1f), jnp.kron(eye, w2f)],
                             axis=1).astype(wd)
        bp = jnp.concatenate([jnp.tile(b1f, P), jnp.tile(b2f, P)]
                             ).reshape(1, 2 * P * C)
        packed = {"w": wp, "b": bp, "p": P}

    return {"c": C, "general": {"w": wg, "b": bg, "c_pad": c_pad}, "packed": packed}


def highway_apply(x, params, *, tile_m=1024):
    """x: [N, T, C] -> [N, T, C]; params from pack_highway_params()."""
    N, T, C = x.shape
    if C != params["c"]:
        raise ValueError("channel mismatch between x and packed params")
    M = N * T
    itemsize = jnp.dtype(x.dtype).itemsize

    packed = params["packed"]
    if packed is not None and M % packed["p"] == 0:
        # Lane-dense fast path: P logical rows per 128-lane row; metadata-only
        # reshape, unmasked full-lane loads/stores, MXU K padded to 128 anyway.
        P = packed["p"]
        w, b = packed["w"], packed["b"]
        rows, width = M // P, P * C            # width == 128
        c_eff = c_pad_eff = width
        desired = max(int(tile_m) // P, 8)
    else:
        # General fallback (C not a divisor of 128, or ragged M): lane-sparse
        # x/out stream, halves 128-lane aligned inside the fused slab.
        w, b = params["general"]["w"], params["general"]["b"]
        rows, width = M, C
        c_eff, c_pad_eff = C, params["general"]["c_pad"]
        desired = int(tile_m)

    # Keep the streamed (double-buffered) x + out blocks well inside VMEM.
    max_rows_by_vmem = max(8, (((24 << 20) // (4 * width * itemsize)) // 8) * 8)
    tm = _block_rows(min(desired, max_rows_by_vmem), rows)
    grid = (pl.cdiv(rows, tm),)                # ragged rows -> masked edge block

    x2d = x.reshape(rows, width)               # row-major contiguous: free

    # VMEM budget derived from the actual blocks (2x = default double buffer)
    # plus headroom for the [tm, 2*c_pad] f32 matmul result.
    vmem_needed = (4 * tm * width * itemsize
                   + 2 * (w.size * w.dtype.itemsize + b.size * b.dtype.itemsize)
                   + tm * 2 * c_pad_eff * 4)
    vmem_limit = int(min(max(2 * vmem_needed, 16 << 20), 56 << 20))

    out2d = pl.pallas_call(
        functools.partial(highway_kernel, c=c_eff, c_pad=c_pad_eff),
        out_shape=jax.ShapeDtypeStruct((rows, width), x.dtype),
        grid_spec=pl.GridSpec(
            grid=grid,
            in_specs=[
                pl.BlockSpec((tm, width), lambda i: (i, 0)),   # x rows: streamed
                pl.BlockSpec(w.shape, lambda i: (0, 0)),       # fused W: VMEM-resident
                pl.BlockSpec(b.shape, lambda i: (0, 0)),       # fused b: VMEM-resident
            ],
            out_specs=pl.BlockSpec((tm, width), lambda i: (i, 0)),
        ),
        compiler_params=pltpu.CompilerParams(
            dimension_semantics=("parallel",),   # independent row tiles (megacore)
            vmem_limit_bytes=vmem_limit,
        ),
    )(x2d, w, b)

    return out2d.reshape(N, T, C)


def highway(x, w1, b1, w2, b2, *, tile_m=1024, weight_dtype=None):
    """Convenience one-shot wrapper (packs params per call; prefer hoisting)."""
    params = pack_highway_params(w1, b1, w2, b2, weight_dtype=weight_dtype)
    return highway_apply(x, params, tile_m=tile_m)


def highway_ref(x, w1, b1, w2, b2):
    h = jnp.maximum(x @ w1 + b1, 0.0)
    t = jax.nn.sigmoid(x @ w2 + b2)
    return h * t + x * (1.0 - t)


if __name__ == "__main__":
    # Shapes consistent with the module: N=2, T=8, C=in_features=out_features=32.
    N, T, C = 2, 8, 32
    key = jax.random.PRNGKey(0)
    kx, kw1, kb1, kw2, kb2, kxl, kxe = jax.random.split(key, 7)

    x = jax.random.normal(kx, (N, T, C), dtype=jnp.float32)

    # Deterministic PyTorch-style init: U(-1/sqrt(in_features), 1/sqrt(in_features)).
    # Weights stored as [C_in, C_out] (transpose of PyTorch's [out, in] layout).
    bound = 1.0 / jnp.sqrt(jnp.float32(C))
    w1 = jax.random.uniform(kw1, (C, C), minval=-bound, maxval=bound, dtype=jnp.float32)
    b1 = jax.random.uniform(kb1, (C,), minval=-bound, maxval=bound, dtype=jnp.float32)
    w2 = jax.random.uniform(kw2, (C, C), minval=-bound, maxval=bound, dtype=jnp.float32)
    b2 = jax.random.uniform(kb2, (C,), minval=-bound, maxval=bound, dtype=jnp.float32)

    # Fuse the weights ONCE (hoisted out of the per-call path).
    params = pack_highway_params(w1, b1, w2, b2)

    # 1) Primary: lane-dense packed path, single block.
    ref = highway_ref(x, w1, b1, w2, b2)
    out = jax.block_until_ready(highway_apply(x, params))
    assert out.shape == (N, T, C)
    assert jnp.allclose(out, ref, atol=1e-5, rtol=1e-5)

    # 2) Multi-block pipelined packed path (small tile forces grid > 1).
    xl = jax.random.normal(kxl, (2, 64, C), dtype=jnp.float32)
    refl = highway_ref(xl, w1, b1, w2, b2)
    outl = jax.block_until_ready(highway_apply(xl, params, tile_m=32))
    assert jnp.allclose(outl, refl, atol=1e-5, rtol=1e-5)

    # 3) Ragged row count (M % 4 != 0) -> general fallback path, no wrapper pad.
    xr = x[:, :7, :]
    refr = highway_ref(xr, w1, b1, w2, b2)
    outr = jax.block_until_ready(highway_apply(xr, params))
    assert jnp.allclose(outr, refr, atol=1e-5, rtol=1e-5)

    # 4) General path with a masked partial edge block (rows not a tile multiple).
    xe = jax.random.normal(kxe, (2, 65, C), dtype=jnp.float32)
    refe = highway_ref(xe, w1, b1, w2, b2)
    oute = jax.block_until_ready(highway_apply(xe, params, tile_m=64))
    assert jnp.allclose(oute, refe, atol=1e-5, rtol=1e-5)

    # 5) bf16 weight slab (v5e MXU-friendly), f32 accumulate + f32 gating.
    params_bf16 = pack_highway_params(w1, b1, w2, b2, weight_dtype=jnp.bfloat16)
    outb = jax.block_until_ready(highway_apply(x, params_bf16))
    assert jnp.allclose(outb, ref, atol=5e-2, rtol=5e-2)

    print("KERNEL_OK")
</pallas_src>

<mosaic_0001>
module attributes {stable_mosaic.version = 11 : i64} {
  func.func @highway_kernel(%arg0: i32, %arg1: memref<4x128xf32, #tpu.memory_space<vmem>>, %arg2: memref<128x256xf32, #tpu.memory_space<vmem>>, %arg3: memref<1x256xf32, #tpu.memory_space<vmem>>, %arg4: memref<4x128xf32, #tpu.memory_space<vmem>>) attributes {dimension_semantics = [#tpu.dimension_semantics<parallel>], iteration_bounds = array<i64: 1>, scalar_prefetch = 0 : i64, scratch_operands = 0 : i64, tpu.core_type = #tpu.core_type<tc>, window_params = [{transform_indices = @transform_0, window_bounds = array<i64: 4, 128>}, {pipeline_mode = #tpu.pipeline_mode<synchronous>, transform_indices = @transform_1, window_bounds = array<i64: 128, 256>}, {pipeline_mode = #tpu.pipeline_mode<synchronous>, transform_indices = @transform_2, window_bounds = array<i64: 1, 256>}, {transform_indices = @transform_3, window_bounds = array<i64: 4, 128>}]} {
    %c0 = arith.constant 0 : index
    %c0_0 = arith.constant 0 : index
    %0 = vector.load %arg1[%c0, %c0_0] : memref<4x128xf32, #tpu.memory_space<vmem>>, vector<4x128xf32>
    %c0_1 = arith.constant 0 : index
    %c0_2 = arith.constant 0 : index
    %1 = vector.load %arg2[%c0_1, %c0_2] : memref<128x256xf32, #tpu.memory_space<vmem>>, vector<128x256xf32>
    %cst = arith.constant dense<0.000000e+00> : vector<4x256xf32>
    %2 = tpu.matmul %0, %1, %cst {dimension_numbers = #tpu.dot_dimension_numbers<[1], [0], [0], [1], [0, 0, 1, 1], [], []>} : vector<4x128xf32>, vector<128x256xf32>, vector<4x256xf32> -> vector<4x256xf32>
    %3 = vector.extract_strided_slice %2 {offsets = [0, 0], sizes = [4, 128], strides = [1, 1]} : vector<4x256xf32> to vector<4x128xf32>
    %c0_3 = arith.constant 0 : index
    %c0_4 = arith.constant 0 : index
    %4 = vector.load %arg3[%c0_3, %c0_4] : memref<1x256xf32, #tpu.memory_space<vmem>>, vector<1x128xf32>
    %5 = vector.broadcast %4 : vector<1x128xf32> to vector<4x128xf32>
    %6 = arith.addf %3, %5 : vector<4x128xf32>
    %cst_5 = arith.constant 0.000000e+00 : f32
    %7 = vector.broadcast %cst_5 : f32 to vector<4x128xf32>
    %8 = arith.maximumf %6, %7 : vector<4x128xf32>
    %9 = vector.extract_strided_slice %2 {offsets = [0, 128], sizes = [4, 128], strides = [1, 1]} : vector<4x256xf32> to vector<4x128xf32>
    %c0_6 = arith.constant 0 : index
    %c128 = arith.constant 128 : index
    %10 = vector.load %arg3[%c0_6, %c128] : memref<1x256xf32, #tpu.memory_space<vmem>>, vector<1x128xf32>
    %11 = vector.broadcast %10 : vector<1x128xf32> to vector<4x128xf32>
    %12 = arith.addf %9, %11 : vector<4x128xf32>
    %13 = arith.negf %12 : vector<4x128xf32>
    %14 = math.exp %13 : vector<4x128xf32>
    %cst_7 = arith.constant 1.000000e+00 : f32
    %15 = vector.broadcast %cst_7 : f32 to vector<4x128xf32>
    %16 = arith.addf %15, %14 : vector<4x128xf32>
    %17 = arith.divf %15, %16 : vector<4x128xf32>
    %18 = arith.subf %8, %0 : vector<4x128xf32>
    %19 = arith.mulf %17, %18 : vector<4x128xf32>
    %20 = arith.addf %0, %19 : vector<4x128xf32>
    %c0_8 = arith.constant 0 : index
    %c0_9 = arith.constant 0 : index
    %21 = vector.load %arg4[%c0_8, %c0_9] : memref<4x128xf32, #tpu.memory_space<vmem>>, vector<4x128xf32>
    tpu.vector_store %arg4[%c0_8, %c0_9], %20 {strides = array<i32>} : memref<4x128xf32, #tpu.memory_space<vmem>>, vector<4x128xf32>,
    return
  }
  func.func @transform_0(%arg0: i32) -> (i32, i32) {
    %c0_i32 = arith.constant 0 : i32
    %c0_i32_0 = arith.constant 0 : i32
    return %arg0, %c0_i32 : i32, i32
  }
  func.func @transform_1(%arg0: i32) -> (i32, i32) {
    %c0_i32 = arith.constant 0 : i32
    %c0_i32_0 = arith.constant 0 : i32
    %c0_i32_1 = arith.constant 0 : i32
    return %c0_i32, %c0_i32_0 : i32, i32
  }
  func.func @transform_2(%arg0: i32) -> (i32, i32) {
    %c0_i32 = arith.constant 0 : i32
    %c0_i32_0 = arith.constant 0 : i32
    %c0_i32_1 = arith.constant 0 : i32
    return %c0_i32, %c0_i32_0 : i32, i32
  }
  func.func @transform_3(%arg0: i32) -> (i32, i32) {
    %c0_i32 = arith.constant 0 : i32
    %c0_i32_0 = arith.constant 0 : i32
    return %arg0, %c0_i32 : i32, i32
  }
}

</mosaic_0001>

<llo_original>
// kernel: tpu_custom_call.1
$region0: #{tpu_custom_call.1}
  #allocation0 [shape = 'u32[]', space=smem, size = 0x4, offset = 0x4, fixed_abs, tag = 'smem constant byte address 0x4 - core index']
  #allocation1 [shape = 'u32[144,128]{1,0:T(1,128)}', space=vmem, size = 0x12000, scoped, tag = 'internal scratch']
  %s0 = inlined_call_operand.hbm [shape: f32[4,128], index: 0, kind: input, shape index: {}]
  %s1 = inlined_call_operand.hbm [shape: f32[128,256], index: 1, kind: input, shape index: {}]
  %s2 = inlined_call_operand.vmem [shape: f32[1,256], index: 2, kind: input, shape index: {}]
  %s3 = inlined_call_operand.hbm [shape: f32[4,128], index: 3, kind: output, shape index: {}]
  %s4 = sld [smem:[#allocation0]]
  $region30: #{tpu_custom_call.1} parent=0
    _
  %s6 = ssub.s32 1, %s4
  %s7 = scalar_select 0, %s6, %s4
  $region1: #{tpu_custom_call.1} parent=0
    #allocation2 [shape = 'u8[2048]{0}', space=vmem, size = 0x800, scoped, tag = 'input window, operand 0, single buffered']
    #allocation3 [shape = 's32[1]{0}', space=sflag, size = 0x4, scoped, tag = 'scoped memory for tpu_custom_call.1']
    #allocation4 [shape = 's32[1]{0}', space=sflag, size = 0x4, scoped, tag = 'scoped memory for tpu_custom_call.1']
    #allocation5 [shape = 'u8[131072]{0}', space=vmem, size = 0x20000, scoped, tag = 'input window, operand 1, single buffered']
    #allocation6 [shape = 's32[1]{0}', space=sflag, size = 0x4, scoped, tag = 'scoped memory for tpu_custom_call.1']
    #allocation7 [shape = 'u8[2048]{0}', space=vmem, size = 0x800, scoped, tag = 'output window, operand 0, single buffered']
    %8 = vsyncpa [#allocation3], 0
    %9 = vsyncpa [#allocation6], 0
    %10 = vsyncpa [#allocation4], 0
    // Predicated region
    $region2: #{tpu_custom_call.1} parent=1 // pred_check
      _
    $region3: #{tpu_custom_call.1} parent=1 // pred_check_branch
      %12 = sbr.rel (0) target = $region5
    $region4: #{tpu_custom_call.1} parent=1 // pred_region
      %s14 = ssub.s32 64, 64
      %15 = vsyncadd [#allocation3], %s14
      %s17 = sshll.u32 [#allocation2], 4
      %s18 = int_to_ptr.vmem [resolvable:$true] %s17
      %20 = dma.hbm_to_vmem [thread:$0]  %s0, 64, %s18, [#allocation3]
    $region5: #{tpu_custom_call.1} parent=1 // pred_fallthru
      _
    // Predicated region
    $region6: #{tpu_custom_call.1} parent=1 // pred_check
      _
    $region7: #{tpu_custom_call.1} parent=1 // pred_check_branch
      %22 = sbr.rel (0) target = $region9
    $region8: #{tpu_custom_call.1} parent=1 // pred_region
      %s24 = ssub.s32 4096, 4096
      %25 = vsyncadd [#allocation6], %s24
      %s26 = sshll.u32 [#allocation5], 4
      %s27 = int_to_ptr.vmem [resolvable:$true] %s26
      %32 = dma.hbm_to_vmem [thread:$0]  %s1, 4096, %s27, [#allocation6], 256, 256, 16
    $region9: #{tpu_custom_call.1} parent=1 // pred_fallthru
      _
    // Predicated region
    $region10: #{tpu_custom_call.1} parent=1 // pred_check
      _
    $region11: #{tpu_custom_call.1} parent=1 // pred_check_branch
      %34 = sbr.rel (0) target = $region13
    $region12: #{tpu_custom_call.1} parent=1 // pred_region
      _
    $region13: #{tpu_custom_call.1} parent=1 // pred_fallthru
      _
    // Predicated region
    $region14: #{tpu_custom_call.1} parent=1 // pred_check
      _
    $region15: #{tpu_custom_call.1} parent=1 // pred_check_branch
      %36 = sbr.rel (0) target = $region17
    $region16: #{tpu_custom_call.1} parent=1 // pred_region
      %37 = dma.done [#allocation3], 64
    $region17: #{tpu_custom_call.1} parent=1 // pred_fallthru
      _
    // Predicated region
    $region18: #{tpu_custom_call.1} parent=1 // pred_check
      _
    $region19: #{tpu_custom_call.1} parent=1 // pred_check_branch
      %39 = sbr.rel (0) target = $region21
    $region20: #{tpu_custom_call.1} parent=1 // pred_region
      %40 = dma.done [#allocation6], 4096
    $region21: #{tpu_custom_call.1} parent=1 // pred_fallthru
      _
    %v41 = vld [vmem:[#allocation2] sm:$0xf]
    %v42 = vld [vmem:[#allocation5] sm:$0xff]
    %v43 = vld [vmem:[#allocation5 + $0x8] sm:$0xff]
    %v44 = vld [vmem:[#allocation5 + $0x10] sm:$0xff]
    %v45 = vld [vmem:[#allocation5 + $0x18] sm:$0xff]
    %v46 = vld [vmem:[#allocation5 + $0x20] sm:$0xff]
    %v47 = vld [vmem:[#allocation5 + $0x28] sm:$0xff]
    %v48 = vld [vmem:[#allocation5 + $0x30] sm:$0xff]
    %v49 = vld [vmem:[#allocation5 + $0x38] sm:$0xff]
    %v50 = vld [vmem:[#allocation5 + $0x40] sm:$0xff]
    %v51 = vld [vmem:[#allocation5 + $0x48] sm:$0xff]
    %v52 = vld [vmem:[#allocation5 + $0x50] sm:$0xff]
    %v53 = vld [vmem:[#allocation5 + $0x58] sm:$0xff]
    %v54 = vld [vmem:[#allocation5 + $0x60] sm:$0xff]
    %v55 = vld [vmem:[#allocation5 + $0x68] sm:$0xff]
    %v56 = vld [vmem:[#allocation5 + $0x70] sm:$0xff]
    %v57 = vld [vmem:[#allocation5 + $0x78] sm:$0xff]
    %v58 = vld [vmem:[#allocation5 + $0x80] sm:$0xff]
    %v59 = vld [vmem:[#allocation5 + $0x88] sm:$0xff]
    %v60 = vld [vmem:[#allocation5 + $0x90] sm:$0xff]
    %v61 = vld [vmem:[#allocation5 + $0x98] sm:$0xff]
    %v62 = vld [vmem:[#allocation5 + $0xa0] sm:$0xff]
    %v63 = vld [vmem:[#allocation5 + $0xa8] sm:$0xff]
    %v64 = vld [vmem:[#allocation5 + $0xb0] sm:$0xff]
    %v65 = vld [vmem:[#allocation5 + $0xb8] sm:$0xff]
    %v66 = vld [vmem:[#allocation5 + $0xc0] sm:$0xff]
    %v67 = vld [vmem:[#allocation5 + $0xc8] sm:$0xff]
    %v68 = vld [vmem:[#allocation5 + $0xd0] sm:$0xff]
    %v69 = vld [vmem:[#allocation5 + $0xd8] sm:$0xff]
    %v70 = vld [vmem:[#allocation5 + $0xe0] sm:$0xff]
    %v71 = vld [vmem:[#allocation5 + $0xe8] sm:$0xff]
    %v72 = vld [vmem:[#allocation5 + $0xf0] sm:$0xff]
    %v73 = vld [vmem:[#allocation5 + $0xf8] sm:$0xff]
    %74 = vmatprep.subr.mxu0 %v43
    %75 = vmatpush1.msra.mxu0 %v42
    %76 = vmatprep.subr.mxu0 %v45
    %77 = vmatpush1.msra.mxu0 %v44
    %78 = vmatprep.subr.mxu0 %v47
    %79 = vmatpush1.msra.mxu0 %v46
    %80 = vmatprep.subr.mxu0 %v49
    %81 = vmatpush1.msra.mxu0 %v48
    %82 = vmatprep.subr.mxu0 %v51
    %83 = vmatpush1.msra.mxu0 %v50
    %84 = vmatprep.subr.mxu0 %v53
    %85 = vmatpush1.msra.mxu0 %v52
    %86 = vmatprep.subr.mxu0 %v55
    %87 = vmatpush1.msra.mxu0 %v54
    %88 = vmatprep.subr.mxu0 %v57
    %89 = vmatpush1.msra.mxu0 %v56
    %90 = vmatprep.subr.mxu0 %v59
    %91 = vmatpush1.msra.mxu0 %v58
    %92 = vmatprep.subr.mxu0 %v61
    %93 = vmatpush1.msra.mxu0 %v60
    %94 = vmatprep.subr.mxu0 %v63
    %95 = vmatpush1.msra.mxu0 %v62
    %96 = vmatprep.subr.mxu0 %v65
    %97 = vmatpush1.msra.mxu0 %v64
    %98 = vmatprep.subr.mxu0 %v67
    %99 = vmatpush1.msra.mxu0 %v66
    %100 = vmatprep.subr.mxu0 %v69
    %101 = vmatpush1.msra.mxu0 %v68
    %102 = vmatprep.subr.mxu0 %v71
    %103 = vmatpush1.msra.mxu0 %v70
    %104 = vmatprep.subr.mxu0 %v73
    %105 = vmatpush1.msra.mxu0 %v72
    %106 = vmatprep.subr.mxu0 0.0
    %107 = vmatpush1.msra.mxu0 0.0
    %108 = vmatprep.subr.mxu0 0.0
    %109 = vmatpush1.msra.mxu0 0.0
    %110 = vmatprep.subr.mxu0 0.0
    %111 = vmatpush1.msra.mxu0 0.0
    %112 = vmatprep.subr.mxu0 0.0
    %113 = vmatpush1.msra.mxu0 0.0
    %114 = vmatprep.subr.mxu0 0.0
    %115 = vmatpush1.msra.mxu0 0.0
    %116 = vmatprep.subr.mxu0 0.0
    %117 = vmatpush1.msra.mxu0 0.0
    %118 = vmatprep.subr.mxu0 0.0
    %119 = vmatpush1.msra.mxu0 0.0
    %120 = vmatprep.subr.mxu0 0.0
    %121 = vmatpush1.msra.mxu0 0.0
    %122 = vmatprep.subr.mxu0 0.0
    %123 = vmatpush1.msra.mxu0 0.0
    %124 = vmatprep.subr.mxu0 0.0
    %125 = vmatpush1.msra.mxu0 0.0
    %126 = vmatprep.subr.mxu0 0.0
    %127 = vmatpush1.msra.mxu0 0.0
    %128 = vmatprep.subr.mxu0 0.0
    %129 = vmatpush1.msra.mxu0 0.0
    %130 = vmatprep.subr.mxu0 0.0
    %131 = vmatpush1.msra.mxu0 0.0
    %132 = vmatprep.subr.mxu0 0.0
    %133 = vmatpush1.msra.mxu0 0.0
    %134 = vmatprep.subr.mxu0 0.0
    %135 = vmatpush1.msra.mxu0 0.0
    %136 = vmatprep.subr.mxu0 0.0
    %137 = vmatpush1.msra.mxu0 0.0
    %138 = vmatprep.mubr.f32.mxu0 0.0
    %139 = vmatmul.mubr.f32.gmra.mrb[0].mxu0 %v41
    %v140 = vpop.f32.mrb[0].mxu0
    %v141 = vadd.f32 0.0, %v140
    %v142 = vpop.f32.mrb[0].mxu0
    %v143 = vadd.f32 0.0, %v142
    %144 = vdwg.mxu0
    %v145 = vld [vmem:[%s2] sm:$0x1]
    %v147 = vlaneseq
    %v148 = vshrl.u32 %v147, 7
    %v149 = vsub.s32 0, %v148
    %v150 = vrot.slane %v145, %v149
    %v152 = vadd.f32 %v141, %v150
    %v153 = vmax.f32 %v152, 0.0
    %v154 = vld [vmem:[%s2 + $0x1] sm:$0x1]
    %v156 = vlaneseq
    %v157 = vshrl.u32 %v156, 7
    %v158 = vsub.s32 0, %v157
    %v159 = vrot.slane %v154, %v158
    %v161 = vadd.f32 %v143, %v159
    %v162 = vxor.u32 %v161, 2147483648
    %v163 = vmul.f32 %v162, 1.442695
    %v164 = vpow.pop %v163
    %v165 = vadd.f32 %v164, 1.0
    %v166 = vrcp.pop %v165
    %v167 = vmul.f32 1.0, %v166
    %v168 = vsub.f32 %v153, %v41
    %v169 = vmul.f32 %v167, %v168
    %v170 = vadd.f32 %v41, %v169
    %171 = vst [vmem:[#allocation7] sm:$0xf] %v170
    // Predicated region
    $region22: #{tpu_custom_call.1} parent=1 // pred_check
      _
    $region23: #{tpu_custom_call.1} parent=1 // pred_check_branch
      %173 = sbr.rel (0) target = $region25
    $region24: #{tpu_custom_call.1} parent=1 // pred_region
      %s175 = ssub.s32 64, 64
      %176 = vsyncadd [#allocation4], %s175
      %s178 = sshll.u32 [#allocation7], 4
      %s179 = int_to_ptr.vmem [resolvable:$true] %s178
      %181 = dma.vmem_to_hbm [thread:$0]  %s179, 64, %s3, [#allocation4]
    $region25: #{tpu_custom_call.1} parent=1 // pred_fallthru
      _
    // Predicated region
    $region26: #{tpu_custom_call.1} parent=1 // pred_check
      _
    $region27: #{tpu_custom_call.1} parent=1 // pred_check_branch
      %183 = sbr.rel (0) target = $region29
    $region28: #{tpu_custom_call.1} parent=1 // pred_region
      %184 = dma.done [#allocation4], 64
    $region29: #{tpu_custom_call.1} parent=1 // pred_fallthru
      _
    %185 = vsyncpa [#allocation3], 1
    %186 = vsyncpa [#allocation6], 1
    %187 = vsyncpa [#allocation4], 1

</llo_original>
